<compile_context>
chip_gen: v5e
topology: v5e:2x2
jax: 0.10.0
libtpu: 0.0.40
codegen_flags: <defaults>
</compile_context>

<pallas_src>
import functools

import jax
import jax.numpy as jnp
from jax.experimental import pallas as pl
from jax.experimental.pallas import tpu as pltpu


def _round_up(x, m):
    return ((x + m - 1) // m) * m


def _pick_tile(n_pad, requested, candidates, multiple, min_grid=1):
    """Pick a tile size dividing n_pad; honor `requested` when it is valid."""
    if (
        requested is not None
        and requested >= multiple
        and requested % multiple == 0
        and n_pad % requested == 0
    ):
        return requested
    for mg in (min_grid, 1):
        for c in candidates:
            if c <= n_pad and n_pad % c == 0 and n_pad // c >= mg:
                return c
    return multiple


def _adj_spmm_kernel(sup_ref, adj_ref, o_ref, *, active, tk, support_resident):
    """grid = (row tiles of adj/output [parallel], node-axis reduction [arbitrary])."""
    k = pl.program_id(1)

    @pl.when(k == 0)
    def _():
        o_ref[...] = jnp.zeros_like(o_ref)

    if support_resident:
        # Whole (n_pad, f_out_p) support is resident in VMEM; slice the k-th stripe.
        start = pl.multiple_of(k * tk, tk)
        sup = sup_ref[pl.ds(start, tk), :]
    else:
        sup = sup_ref[...]

    # Accumulate directly into the resident f32 output block.
    o_ref[...] += jnp.dot(adj_ref[...], sup, preferred_element_type=jnp.float32)

    if active:
        @pl.when(k == pl.num_programs(1) - 1)
        def _():
            o_ref[...] = jnp.maximum(o_ref[...], 0.0)


def prepare_adjacency(adj, compute_dtype=jnp.bfloat16):
    """Pad the dense adjacency to a 128 multiple and cast to the MXU dtype.

    Call this ONCE per graph (adj is static in SDCN) and reuse the result
    across layers / training steps, so the O(N^2) pad/cast is not re-done on
    every forward call.
    """
    n = adj.shape[0]
    assert adj.shape == (n, n), adj.shape
    n_pad = _round_up(n, 128)
    return jnp.pad(adj.astype(compute_dtype), ((0, n_pad - n), (0, n_pad - n)))


def gnn_layer_forward(
    features,
    adj,
    weight,
    active=True,
    *,
    compute_dtype=jnp.bfloat16,   # MXU-native; f32 accumulation keeps accuracy
    tm=None,                      # adj/output row tile (None -> auto, up to 512)
    tk=None,                      # node-axis reduction tile (None -> auto, up to 2048)
    min_pallas_work=1 << 18,
):
    """Pallas implementation of GNNLayer.forward.  Returns float32 (N, F_out).

    `adj` may be the raw (N, N) matrix or the output of prepare_adjacency()
    (padded, already in compute_dtype) -- the latter is the fast path.
    """
    N, F_in = features.shape
    F_in2, F_out = weight.shape
    assert F_in == F_in2, (features.shape, weight.shape)

    cd = jnp.dtype(compute_dtype)
    n_pad = _round_up(N, 128)
    f_out_p = _round_up(F_out, 128)

    if adj.shape == (n_pad, n_pad) and adj.dtype == cd:
        adj_p = adj               # already prepared (preferred path)
        adj_raw = None
    else:
        assert adj.shape == (N, N), adj.shape
        adj_raw = adj
        adj_p = None

    # Tiny problems: kernel launch + padding overhead dominates; let XLA fuse.
    if N * N * max(F_out, 1) < min_pallas_work:
        a = adj_raw if adj_raw is not None else adj[:N, :N]
        support = jnp.dot(features, weight)
        out = jnp.dot(a.astype(support.dtype), support)
        return jnp.maximum(out, 0.0) if active else out

    if adj_p is None:
        adj_p = prepare_adjacency(adj_raw, cd)

    # support = features @ W: tiny matmul, hoisted out of the kernel.
    support = jnp.dot(
        features.astype(cd), weight.astype(cd), preferred_element_type=jnp.float32
    ).astype(cd)
    sup_p = jnp.pad(support, ((0, n_pad - N), (0, f_out_p - F_out)))

    # Tile selection: must divide n_pad; keep >= 2 row tiles so the parallel
    # axis can shard across v7x's two TensorCores.
    tm = _pick_tile(n_pad, tm, (512, 256, 128), multiple=8, min_grid=2)
    tk = _pick_tile(n_pad, tk, (2048, 1024, 512, 256, 128), multiple=128, min_grid=1)
    grid = (n_pad // tm, n_pad // tk)
    isz = cd.itemsize

    # Keep the whole support resident in VMEM when small (~1 MiB at N=4K),
    # otherwise stream (tk, f_out_p) support tiles like adj.
    support_resident = n_pad * f_out_p * isz <= 8 * 2**20
    if support_resident:
        sup_spec = pl.BlockSpec((n_pad, f_out_p), lambda i, k: (0, 0))
    else:
        sup_spec = pl.BlockSpec((tk, f_out_p), lambda i, k: (k, 0))

    vmem_need = (
        2 * tm * tk * isz                                      # adj (double-buffered)
        + (n_pad * f_out_p * isz if support_resident
           else 2 * tk * f_out_p * isz)                        # support
        + 2 * tm * f_out_p * 4                                 # f32 output tile
    )
    # Cap at 40 MiB: leaves headroom on v7x's 64 MiB physical VMEM per TC.
    vmem_limit = int(min(40 * 2**20, max(24 * 2**20, 2 * vmem_need)))

    flops = 2.0 * n_pad * n_pad * f_out_p
    bytes_accessed = (
        n_pad * n_pad * isz
        + (n_pad * f_out_p * isz if support_resident
           else grid[0] * n_pad * f_out_p * isz)
        + n_pad * f_out_p * 4
    )

    out_p = pl.pallas_call(
        functools.partial(
            _adj_spmm_kernel, active=active, tk=tk, support_resident=support_resident
        ),
        out_shape=jax.ShapeDtypeStruct((n_pad, f_out_p), jnp.float32),
        grid_spec=pltpu.PrefetchScalarGridSpec(
            num_scalar_prefetch=0,
            grid=grid,
            in_specs=[
                sup_spec,                                      # support (resident)
                pl.BlockSpec((tm, tk), lambda i, k: (i, k)),   # adj stream
            ],
            out_specs=pl.BlockSpec((tm, f_out_p), lambda i, k: (i, 0)),
        ),
        compiler_params=pltpu.CompilerParams(
            dimension_semantics=("parallel", "arbitrary"),
            vmem_limit_bytes=vmem_limit,
        ),
        cost_estimate=pl.CostEstimate(
            flops=int(flops), transcendentals=0, bytes_accessed=int(bytes_accessed)
        ),
    )(sup_p, adj_p)

    return out_p[:N, :F_out]


def init_gnn_weight(key, in_features, out_features, dtype=jnp.float32):
    """Deterministic xavier_uniform_ equivalent."""
    bound = jnp.sqrt(6.0 / (in_features + out_features))
    return jax.random.uniform(
        key, (in_features, out_features), dtype=dtype, minval=-bound, maxval=bound
    )


if __name__ == "__main__":
    # Small-but-non-trivial shapes so the tiled Pallas path actually runs.
    N, in_features, out_features = 512, 128, 64

    key = jax.random.PRNGKey(0)
    k_feat, k_adj, k_w = jax.random.split(key, 3)

    features = jax.random.normal(k_feat, (N, in_features), dtype=jnp.float32)
    # Dense row-normalized adjacency (stands in for the sparse adj of SDCN).
    adj_raw = jax.random.uniform(k_adj, (N, N), dtype=jnp.float32)
    adj = adj_raw / jnp.sum(adj_raw, axis=1, keepdims=True)
    weight = init_gnn_weight(k_w, in_features, out_features)

    # Pad/cast the static adjacency ONCE and reuse it across calls.
    adj_prepared = prepare_adjacency(adj)

    # 1) explicit small tiles -> grid (2, 2): exercises both the parallel row
    #    axis and the k-accumulation / fused-ReLU finalize path.
    out_tiled = gnn_layer_forward(
        features, adj_prepared, weight, active=True, tm=256, tk=256
    )
    # 2) default (auto, large-tile) selection.
    out_default = gnn_layer_forward(features, adj_prepared, weight, active=True)

    out_tiled, out_default = jax.block_until_ready((out_tiled, out_default))
    assert out_tiled.shape == (N, out_features)
    assert out_default.shape == (N, out_features)

    # Reference with the same numerics as the kernel (bf16 MXU inputs,
    # f32 accumulation, bf16 support intermediate).
    fb = features.astype(jnp.bfloat16)
    ab = adj.astype(jnp.bfloat16)
    wb = weight.astype(jnp.bfloat16)
    sup_ref = jnp.dot(fb, wb, preferred_element_type=jnp.float32).astype(jnp.bfloat16)
    ref = jnp.maximum(jnp.dot(ab, sup_ref, preferred_element_type=jnp.float32), 0.0)

    err1 = float(jnp.max(jnp.abs(out_tiled - ref)))
    err2 = float(jnp.max(jnp.abs(out_default - ref)))
    assert jnp.allclose(out_tiled, ref, atol=1e-3, rtol=1e-2), err1
    assert jnp.allclose(out_default, ref, atol=1e-3, rtol=1e-2), err2

    print("KERNEL_OK")
</pallas_src>

<mosaic_0001>
module attributes {stable_mosaic.version = 11 : i64} {
  func.func @_adj_spmm_kernel(%arg0: i32, %arg1: i32, %arg2: memref<512x128xbf16, #tpu.memory_space<vmem>>, %arg3: memref<256x256xbf16, #tpu.memory_space<vmem>>, %arg4: memref<256x128xf32, #tpu.memory_space<vmem>>) attributes {dimension_semantics = [#tpu.dimension_semantics<parallel>, #tpu.dimension_semantics<arbitrary>], iteration_bounds = array<i64: 2, 2>, scalar_prefetch = 0 : i64, scratch_operands = 0 : i64, tpu.core_type = #tpu.core_type<tc>, window_params = [{pipeline_mode = #tpu.pipeline_mode<synchronous>, transform_indices = @transform_0, window_bounds = array<i64: 512, 128>}, {transform_indices = @transform_1, window_bounds = array<i64: 256, 256>}, {transform_indices = @transform_2, window_bounds = array<i64: 256, 128>}]} {
    %c0_i32 = arith.constant 0 : i32
    %0 = arith.cmpi eq, %arg1, %c0_i32 : i32
    %1 = arith.extui %0 : i1 to i32
    %c0_i32_0 = arith.constant 0 : i32
    %2 = arith.cmpi ne, %1, %c0_i32_0 : i32
    scf.if %2 {
      %cst_8 = arith.constant 0.000000e+00 : f32
      %15 = vector.broadcast %cst_8 : f32 to vector<256x128xf32>
      %c0_9 = arith.constant 0 : index
      %c0_10 = arith.constant 0 : index
      %16 = vector.load %arg4[%c0_9, %c0_10] : memref<256x128xf32, #tpu.memory_space<vmem>>, vector<256x128xf32>
      tpu.vector_store %arg4[%c0_9, %c0_10], %15 {strides = array<i32>} : memref<256x128xf32, #tpu.memory_space<vmem>>, vector<256x128xf32>,
    } else {
    }
    %c256_i32 = arith.constant 256 : i32
    %3 = arith.muli %arg1, %c256_i32 : i32
    %4 = tpu.assume_multiple %3, 256 : i32
    %5 = arith.index_cast %4 : i32 to index
    %c0 = arith.constant 0 : index
    %6 = vector.load %arg2[%5, %c0] : memref<512x128xbf16, #tpu.memory_space<vmem>>, vector<256x128xbf16>
    %c0_1 = arith.constant 0 : index
    %c0_2 = arith.constant 0 : index
    %7 = vector.load %arg4[%c0_1, %c0_2] : memref<256x128xf32, #tpu.memory_space<vmem>>, vector<256x128xf32>
    %c0_3 = arith.constant 0 : index
    %c0_4 = arith.constant 0 : index
    %8 = vector.load %arg3[%c0_3, %c0_4] : memref<256x256xbf16, #tpu.memory_space<vmem>>, vector<256x256xbf16>
    %cst = arith.constant dense<0.000000e+00> : vector<256x128xf32>
    %9 = tpu.matmul %8, %6, %cst {dimension_numbers = #tpu.dot_dimension_numbers<[1], [0], [0], [1], [0, 0, 1, 1], [], []>} : vector<256x256xbf16>, vector<256x128xbf16>, vector<256x128xf32> -> vector<256x128xf32>
    %10 = arith.addf %7, %9 : vector<256x128xf32>
    %c0_5 = arith.constant 0 : index
    %c0_6 = arith.constant 0 : index
    %11 = vector.load %arg4[%c0_5, %c0_6] : memref<256x128xf32, #tpu.memory_space<vmem>>, vector<256x128xf32>
    tpu.vector_store %arg4[%c0_5, %c0_6], %10 {strides = array<i32>} : memref<256x128xf32, #tpu.memory_space<vmem>>, vector<256x128xf32>,
    %c1_i32 = arith.constant 1 : i32
    %12 = arith.cmpi eq, %arg1, %c1_i32 : i32
    %13 = arith.extui %12 : i1 to i32
    %c0_i32_7 = arith.constant 0 : i32
    %14 = arith.cmpi ne, %13, %c0_i32_7 : i32
    scf.if %14 {
      %c0_8 = arith.constant 0 : index
      %c0_9 = arith.constant 0 : index
      %15 = vector.load %arg4[%c0_8, %c0_9] : memref<256x128xf32, #tpu.memory_space<vmem>>, vector<256x128xf32>
      %cst_10 = arith.constant 0.000000e+00 : f32
      %16 = vector.broadcast %cst_10 : f32 to vector<256x128xf32>
      %17 = arith.maximumf %15, %16 : vector<256x128xf32>
      %c0_11 = arith.constant 0 : index
      %c0_12 = arith.constant 0 : index
      %18 = vector.load %arg4[%c0_11, %c0_12] : memref<256x128xf32, #tpu.memory_space<vmem>>, vector<256x128xf32>
      tpu.vector_store %arg4[%c0_11, %c0_12], %17 {strides = array<i32>} : memref<256x128xf32, #tpu.memory_space<vmem>>, vector<256x128xf32>,
    } else {
    }
    return
  }
  func.func @transform_0(%arg0: i32, %arg1: i32) -> (i32, i32) {
    %c0_i32 = arith.constant 0 : i32
    %c0_i32_0 = arith.constant 0 : i32
    %c0_i32_1 = arith.constant 0 : i32
    return %c0_i32, %c0_i32_0 : i32, i32
  }
  func.func @transform_1(%arg0: i32, %arg1: i32) -> (i32, i32) {
    %c0_i32 = arith.constant 0 : i32
    return %arg0, %arg1 : i32, i32
  }
  func.func @transform_2(%arg0: i32, %arg1: i32) -> (i32, i32) {
    %c0_i32 = arith.constant 0 : i32
    %c0_i32_0 = arith.constant 0 : i32
    return %arg0, %c0_i32 : i32, i32
  }
}

</mosaic_0001>

<llo_original>
// kernel: tpu_custom_call.1
$region0: #{tpu_custom_call.1}
  #allocation0 [shape = 'u32[]', space=smem, size = 0x4, offset = 0x4, fixed_abs, tag = 'smem constant byte address 0x4 - core index']
  #allocation1 [shape = 'u32[72,128]{1,0:T(1,128)}', space=vmem, size = 0x9000, scoped, tag = 'internal scratch']
  %s0 = inlined_call_operand.hbm [shape: bf16[512,128], index: 0, kind: input, shape index: {}]
  %s1 = inlined_call_operand.hbm [shape: bf16[512,512], index: 1, kind: input, shape index: {}]
  %s2 = inlined_call_operand.hbm [shape: f32[512,128], index: 2, kind: output, shape index: {}]
  %s3 = sld [smem:[#allocation0]]
  $region57: #{tpu_custom_call.1} parent=0
    _
  %s5 = ssub.s32 1, %s3
  %s6 = scalar_select 0, %s5, %s3
  $region1: #{tpu_custom_call.1} parent=0
    #allocation2 [shape = 'u8[131072]{0}', space=vmem, size = 0x20000, scoped, tag = 'input window, operand 0, single buffered']
    #allocation3 [shape = 's32[2]{0}', space=sflag, size = 0x8, scoped, tag = 'scoped memory for tpu_custom_call.1']
    #allocation4 [shape = 's32[2]{0}', space=sflag, size = 0x8, scoped, tag = 'scoped memory for tpu_custom_call.1']
    #allocation5 [shape = 'u8[262144]{0}', space=vmem, size = 0x40000, scoped, tag = 'input window, operand 1']
    #allocation6 [shape = 's32[2]{0}', space=sflag, size = 0x8, scoped, tag = 'scoped memory for tpu_custom_call.1']
    #allocation7 [shape = 'u8[262144]{0}', space=vmem, size = 0x40000, scoped, tag = 'output window, operand 0']
    %7 = vsyncpa [#allocation3], 0
    %8 = vsyncpa [#allocation6], 0
    %s9 = scalar_lea.sflag [#allocation6], 1
    %10 = vsyncpa %s9, 0
    %11 = vsyncpa [#allocation4], 0
    %s12 = scalar_lea.sflag [#allocation4], 1
    %13 = vsyncpa %s12, 0
    loop: start=0, step=1, limit=6
    $region2: #{tpu_custom_call.1} parent=1 // loop_pre_header
      _
    $region3: #{tpu_custom_call.1} parent=1 // loop_header
      %s15 = sphi 0, %s19
      %p16 = scmp.ge.s32.totalorder %s15, 6
      %s22 = sphi 0, %s34
      %s23 = sphi 0, %s30
      %s24 = sphi 0, %s22
      %s25 = sphi 0, %s23
      %s26 = sphi 0, %s24
      %s27 = sphi 0, %s25
      %s35 = sphi 0, %s35
      %s37 = sphi 0, %s35
      %s38 = sphi 0, %s37
      %s52 = sphi 0, %s38
      %s60 = sphi 0, %s62
      %s63 = sphi 0, %s60
      %s64 = sphi 0, %s63
      %s80 = sphi 0, %s64
      %s86 = sphi 0, %s88
      %s89 = sphi 0, %s86
      %s90 = sphi 0, %s89
      %s106 = sphi 0, %s90
    $region4: #{tpu_custom_call.1} parent=1 // loop_header_branch
      %18 = sbr.rel (%p16) target = $region8
    $region5: #{tpu_custom_call.1} parent=1 // loop_body
      %s20 = ssub.s32 %s15, 1
      %s21 = ssub.s32 %s15, 2
      %s28 = sadd.s32 1, %s23
      %p29 = scmp.ge.s32.totalorder %s28, 2
      %s30 = scalar_select %p29, 0, %s28
      %s31 = sadd.s32 1, %s22
      %s32 = scalar_select %p29, %s31, %s22
      %p33 = scmp.ge.s32.totalorder %s32, 2
      %s34 = scalar_select %p33, 0, %s32
      %s36 = sadd.s32 %s35, 1
      %p39 = scmp.eq.s32.totalorder %s15, 3
      %p40 = scmp.ne.s32.totalorder %s35, %s37
      %p41 = scmp.eq.s32.totalorder %s15, 0
      %p42 = por %p40, %p41
      %p43 = scmp.ne.s32.totalorder %s35, %s37
      %p44 = scmp.eq.s32.totalorder %s20, 3
      %p45 = por %p43, %p44
      %p46 = scmp.ne.s32.totalorder %s37, %s38
      %p47 = scmp.eq.s32.totalorder %s20, 0
      %p48 = por %p46, %p47
      %p49 = scmp.ne.s32.totalorder %s37, %s38
      %p50 = scmp.eq.s32.totalorder %s21, 3
      %p51 = por %p49, %p50
      %p53 = scmp.ne.s32.totalorder %s38, %s52
      %p54 = scmp.eq.s32.totalorder %s21, 0
      %p55 = por %p53, %p54
      %s56 = ssub.s32 %s22, %s34
      %s57 = ssub.s32 %s23, %s30
      %s58 = sor.u32 %s56, %s57
      %p59 = scmp.eq.s32.totalorder %s58, 0
      %s61 = sadd.s32 %s60, 1
      %s62 = scalar_select %p59, %s60, %s61
      %p65 = pneg %p59
      %p66 = scmp.eq.s32.totalorder %s15, 3
      %p67 = por %p65, %p66
      %p68 = scmp.ne.s32.totalorder %s60, %s63
      %p69 = scmp.eq.s32.totalorder %s15, 0
      %p70 = por %p68, %p69
      %p71 = scmp.ne.s32.totalorder %s60, %s63
      %p72 = scmp.eq.s32.totalorder %s20, 3
      %p73 = por %p71, %p72
      %p74 = scmp.ne.s32.totalorder %s63, %s64
      %p75 = scmp.eq.s32.totalorder %s20, 0
      %p76 = por %p74, %p75
      %p77 = scmp.ne.s32.totalorder %s63, %s64
      %p78 = scmp.eq.s32.totalorder %s21, 3
      %p79 = por %p77, %p78
      %p81 = scmp.ne.s32.totalorder %s64, %s80
      %p82 = scmp.eq.s32.totalorder %s21, 0
      %p83 = por %p81, %p82
      %s84 = ssub.s32 %s22, %s34
      %p85 = scmp.eq.s32.totalorder %s84, 0
      %s87 = sadd.s32 %s86, 1
      %s88 = scalar_select %p85, %s86, %s87
      %p91 = pneg %p85
      %p92 = scmp.eq.s32.totalorder %s15, 3
      %p93 = por %p91, %p92
      %p94 = scmp.ne.s32.totalorder %s86, %s89
      %p95 = scmp.eq.s32.totalorder %s15, 0
      %p96 = por %p94, %p95
      %p97 = scmp.ne.s32.totalorder %s86, %s89
      %p98 = scmp.eq.s32.totalorder %s20, 3
      %p99 = por %p97, %p98
      %p100 = scmp.ne.s32.totalorder %s89, %s90
      %p101 = scmp.eq.s32.totalorder %s20, 0
      %p102 = por %p100, %p101
      %p103 = scmp.ne.s32.totalorder %s89, %s90
      %p104 = scmp.eq.s32.totalorder %s21, 3
      %p105 = por %p103, %p104
      %p107 = scmp.ne.s32.totalorder %s90, %s106
      %p108 = scmp.eq.s32.totalorder %s21, 0
      %p109 = por %p107, %p108
      %p110 = scmp.le.s32.totalorder 1, %s15
      %p111 = scmp.lt.s32.totalorder %s15, 5
      %p112 = pnand %p110, %p111
      %p113 = pneg %p112
      // Predicated region
      $region9: #{tpu_custom_call.1} parent=5 // pred_check
        _
      $region10: #{tpu_custom_call.1} parent=5 // pred_check_branch
        %115 = sbr.rel (%p112) target = $region12
      $region11: #{tpu_custom_call.1} parent=5 // pred_region
        %s116 = ssub.s32 %s15, 1
        // Predicated region
        $region13: #{tpu_custom_call.1} parent=11 // pred_check
          %p117 = pneg %p48
        $region14: #{tpu_custom_call.1} parent=11 // pred_check_branch
          %119 = sbr.rel (%p117) target = $region16
        $region15: #{tpu_custom_call.1} parent=11 // pred_region
          %121 = vsyncadd [#allocation3], 0
          %s122 = sshll.u32 %s0, 4
          %s123 = int_to_ptr.hbm [resolvable:$true] %s122
          %s124 = sshll.u32 [#allocation2], 4
          %s125 = int_to_ptr.vmem [resolvable:$true] %s124
          %130 = dma.hbm_to_vmem [thread:$0]  %s123, 4096, %s125, [#allocation3], 64, 64, 4
        $region16: #{tpu_custom_call.1} parent=11 // pred_fallthru
          _
      $region12: #{tpu_custom_call.1} parent=5 // pred_fallthru
        _
      %p131 = scmp.lt.s32.totalorder %s15, 4
      // Predicated region
      $region17: #{tpu_custom_call.1} parent=5 // pred_check
        %p132 = pneg %p131
      $region18: #{tpu_custom_call.1} parent=5 // pred_check_branch
        %134 = sbr.rel (%p132) target = $region20
      $region19: #{tpu_custom_call.1} parent=5 // pred_region
        // Predicated region
        $region21: #{tpu_custom_call.1} parent=19 // pred_check
          %p135 = pneg %p70
        $region22: #{tpu_custom_call.1} parent=19 // pred_check_branch
          %137 = sbr.rel (%p135) target = $region24
        $region23: #{tpu_custom_call.1} parent=19 // pred_region
          %s138 = sand.u32 %s60, 1
          %s139 = scalar_lea.sflag [#allocation6], %s138
          %s140 = sand.u32 %s60, 1
          %s141 = smul.addr %s140, 256
          %s142 = scalar_lea.vmem [#allocation5], %s141
          %s143 = smul.u32 32, %s22
          %s144 = smul.u32 2, %s23
          %146 = vsyncadd %s139, 0
          %s147 = smul.addr %s143, 4
          %s148 = sadd.s32 %s144, %s147
          %s149 = smul.addr %s148, 4
          %s150 = scalar_lea.hbm %s1, %s149
          %s151 = sshll.u32 %s150, 4
          %s152 = int_to_ptr.hbm [resolvable:$true] %s151
          %s153 = sshll.u32 %s142, 4
          %s154 = int_to_ptr.vmem [resolvable:$true] %s153
          %159 = dma.hbm_to_vmem [thread:$0]  %s152, 4096, %s154, %s139, 256, 128, 8
        $region24: #{tpu_custom_call.1} parent=19 // pred_fallthru
          _
      $region20: #{tpu_custom_call.1} parent=5 // pred_fallthru
        _
      %p160 = scmp.le.s32.totalorder 1, %s15
      %p161 = scmp.lt.s32.totalorder %s15, 5
      %p162 = pnand %p160, %p161
      %p163 = pneg %p162
      // Predicated region
      $region25: #{tpu_custom_call.1} parent=5 // pred_check
        _
      $region26: #{tpu_custom_call.1} parent=5 // pred_check_branch
        %165 = sbr.rel (%p162) target = $region28
      $region27: #{tpu_custom_call.1} parent=5 // pred_region
        %s166 = ssub.s32 %s15, 1
        // Predicated region
        $region29: #{tpu_custom_call.1} parent=27 // pred_check
          %p167 = pneg %p48
        $region30: #{tpu_custom_call.1} parent=27 // pred_check_branch
          %169 = sbr.rel (%p167) target = $region32
        $region31: #{tpu_custom_call.1} parent=27 // pred_region
          %171 = dma.done [#allocation3], 4096
        $region32: #{tpu_custom_call.1} parent=27 // pred_fallthru
          _
        %s172 = sand.u32 %s63, 1
        %s173 = scalar_lea.sflag [#allocation6], %s172
        %s174 = sand.u32 %s63, 1
        %s175 = smul.addr %s174, 256
        %s176 = scalar_lea.vmem [#allocation5], %s175
        // Predicated region
        $region33: #{tpu_custom_call.1} parent=27 // pred_check
          %p177 = pneg %p76
        $region34: #{tpu_custom_call.1} parent=27 // pred_check_branch
          %179 = sbr.rel (%p177) target = $region36
        $region35: #{tpu_custom_call.1} parent=27 // pred_region
          %181 = dma.done %s173, 4096
        $region36: #{tpu_custom_call.1} parent=27 // pred_fallthru
          _
        %p182 = pneg %p48
        %p183 = pneg %p45
        %s184 = sand.u32 %s63, 1
        %s185 = scalar_lea.sflag [#allocation6], %s184
        %s186 = sand.u32 %s63, 1
        %s187 = smul.addr %s186, 256
        %s188 = scalar_lea.vmem [#allocation5], %s187
        %p189 = pneg %p76
        %p190 = pneg %p73
        %p191 = pneg %p102
        %p192 = pneg %p99
        %s193 = sand.u32 %s89, 1
        %s194 = scalar_lea.sflag [#allocation4], %s193
        %s195 = sand.u32 %s89, 1
        %s196 = smul.addr %s195, 256
        %s197 = scalar_lea.vmem [#allocation7], %s196
        %s198 = smul.u32 32, %s24
        %s199 = smul.u32 2, %s25
        %s200 = smul.u32 32, %s24
        %p201 = scmp.eq.s32.totalorder %s25, 0
        // Predicated region
        $region37: #{tpu_custom_call.1} parent=27 // pred_check
          %p202 = pneg %p201
        $region38: #{tpu_custom_call.1} parent=27 // pred_check_branch
          %204 = sbr.rel (%p202) target = $region40
        $region39: #{tpu_custom_call.1} parent=27 // pred_region
          %205 = vst [vmem:[%s197] sm:$0xff] 0.0
          %206 = vst [vmem:[%s197 + $0x8] sm:$0xff] 0.0
          %207 = vst [vmem:[%s197 + $0x10] sm:$0xff] 0.0
          %208 = vst [vmem:[%s197 + $0x18] sm:$0xff] 0.0
          %209 = vst [vmem:[%s197 + $0x20] sm:$0xff] 0.0
          %210 = vst [vmem:[%s197 + $0x28] sm:$0xff] 0.0
          %211 = vst [vmem:[%s197 + $0x30] sm:$0xff] 0.0
          %212 = vst [vmem:[%s197 + $0x38] sm:$0xff] 0.0
          %213 = vst [vmem:[%s197 + $0x40] sm:$0xff] 0.0
          %214 = vst [vmem:[%s197 + $0x48] sm:$0xff] 0.0
          %215 = vst [vmem:[%s197 + $0x50] sm:$0xff] 0.0
          %216 = vst [vmem:[%s197 + $0x58] sm:$0xff] 0.0
          %217 = vst [vmem:[%s197 + $0x60] sm:$0xff] 0.0
          %218 = vst [vmem:[%s197 + $0x68] sm:$0xff] 0.0
          %219 = vst [vmem:[%s197 + $0x70] sm:$0xff] 0.0
          %220 = vst [vmem:[%s197 + $0x78] sm:$0xff] 0.0
          %221 = vst [vmem:[%s197 + $0x80] sm:$0xff] 0.0
          %222 = vst [vmem:[%s197 + $0x88] sm:$0xff] 0.0
          %223 = vst [vmem:[%s197 + $0x90] sm:$0xff] 0.0
          %224 = vst [vmem:[%s197 + $0x98] sm:$0xff] 0.0
          %225 = vst [vmem:[%s197 + $0xa0] sm:$0xff] 0.0
          %226 = vst [vmem:[%s197 + $0xa8] sm:$0xff] 0.0
          %227 = vst [vmem:[%s197 + $0xb0] sm:$0xff] 0.0
          %228 = vst [vmem:[%s197 + $0xb8] sm:$0xff] 0.0
          %229 = vst [vmem:[%s197 + $0xc0] sm:$0xff] 0.0
          %230 = vst [vmem:[%s197 + $0xc8] sm:$0xff] 0.0
          %231 = vst [vmem:[%s197 + $0xd0] sm:$0xff] 0.0
          %232 = vst [vmem:[%s197 + $0xd8] sm:$0xff] 0.0
          %233 = vst [vmem:[%s197 + $0xe0] sm:$0xff] 0.0
          %234 = vst [vmem:[%s197 + $0xe8] sm:$0xff] 0.0
          %235 = vst [vmem:[%s197 + $0xf0] sm:$0xff] 0.0
          %236 = vst [vmem:[%s197 + $0xf8] sm:$0xff] 0.0
        $region40: #{tpu_custom_call.1} parent=27 // pred_fallthru
          _
        %s237 = smul.u32 %s25, 256
        %s238 = sshra.s32 %s237, 3
        %s239 = sand.u32 %s237, 7
        %s240 = smul.addr %s238, 4
        %s241 = scalar_lea.vmem [#allocation2], %s240
        %v242 = vld [vmem:[%s241] sm:$0xf]
        %v243 = vld [vmem:[%s241 + $0x4] sm:$0xf]
        %v244 = vld [vmem:[%s241 + $0x8] sm:$0xf]
        %v245 = vld [vmem:[%s241 + $0xc] sm:$0xf]
        %v246 = vld [vmem:[%s241 + $0x10] sm:$0xf]
        %v247 = vld [vmem:[%s241 + $0x14] sm:$0xf]
        %v248 = vld [vmem:[%s241 + $0x18] sm:$0xf]
        %v249 = vld [vmem:[%s241 + $0x1c] sm:$0xf]
        %v250 = vld [vmem:[%s241 + $0x20] sm:$0xf]
        %v251 = vld [vmem:[%s241 + $0x24] sm:$0xf]
        %v252 = vld [vmem:[%s241 + $0x28] sm:$0xf]
        %v253 = vld [vmem:[%s241 + $0x2c] sm:$0xf]
        %v254 = vld [vmem:[%s241 + $0x30] sm:$0xf]
        %v255 = vld [vmem:[%s241 + $0x34] sm:$0xf]
        %v256 = vld [vmem:[%s241 + $0x38] sm:$0xf]
        %v257 = vld [vmem:[%s241 + $0x3c] sm:$0xf]
        %v258 = vld [vmem:[%s241 + $0x40] sm:$0xf]
        %v259 = vld [vmem:[%s241 + $0x44] sm:$0xf]
        %v260 = vld [vmem:[%s241 + $0x48] sm:$0xf]
        %v261 = vld [vmem:[%s241 + $0x4c] sm:$0xf]
        %v262 = vld [vmem:[%s241 + $0x50] sm:$0xf]
        %v263 = vld [vmem:[%s241 + $0x54] sm:$0xf]
        %v264 = vld [vmem:[%s241 + $0x58] sm:$0xf]
        %v265 = vld [vmem:[%s241 + $0x5c] sm:$0xf]
        %v266 = vld [vmem:[%s241 + $0x60] sm:$0xf]
        %v267 = vld [vmem:[%s241 + $0x64] sm:$0xf]
        %v268 = vld [vmem:[%s241 + $0x68] sm:$0xf]
        %v269 = vld [vmem:[%s241 + $0x6c] sm:$0xf]
        %v270 = vld [vmem:[%s241 + $0x70] sm:$0xf]
        %v271 = vld [vmem:[%s241 + $0x74] sm:$0xf]
        %v272 = vld [vmem:[%s241 + $0x78] sm:$0xf]
        %v273 = vld [vmem:[%s241 + $0x7c] sm:$0xf]
        %v274 = vld [vmem:[%s197] sm:$0xff]
        %v275 = vld [vmem:[%s197 + $0x8] sm:$0xff]
        %v276 = vld [vmem:[%s197 + $0x10] sm:$0xff]
        %v277 = vld [vmem:[%s197 + $0x18] sm:$0xff]
        %v278 = vld [vmem:[%s197 + $0x20] sm:$0xff]
        %v279 = vld [vmem:[%s197 + $0x28] sm:$0xff]
        %v280 = vld [vmem:[%s197 + $0x30] sm:$0xff]
        %v281 = vld [vmem:[%s197 + $0x38] sm:$0xff]
        %v282 = vld [vmem:[%s197 + $0x40] sm:$0xff]
        %v283 = vld [vmem:[%s197 + $0x48] sm:$0xff]
        %v284 = vld [vmem:[%s197 + $0x50] sm:$0xff]
        %v285 = vld [vmem:[%s197 + $0x58] sm:$0xff]
        %v286 = vld [vmem:[%s197 + $0x60] sm:$0xff]
        %v287 = vld [vmem:[%s197 + $0x68] sm:$0xff]
        %v288 = vld [vmem:[%s197 + $0x70] sm:$0xff]
        %v289 = vld [vmem:[%s197 + $0x78] sm:$0xff]
        %v290 = vld [vmem:[%s197 + $0x80] sm:$0xff]
        %v291 = vld [vmem:[%s197 + $0x88] sm:$0xff]
        %v292 = vld [vmem:[%s197 + $0x90] sm:$0xff]
        %v293 = vld [vmem:[%s197 + $0x98] sm:$0xff]
        %v294 = vld [vmem:[%s197 + $0xa0] sm:$0xff]
        %v295 = vld [vmem:[%s197 + $0xa8] sm:$0xff]
        %v296 = vld [vmem:[%s197 + $0xb0] sm:$0xff]
        %v297 = vld [vmem:[%s197 + $0xb8] sm:$0xff]
        %v298 = vld [vmem:[%s197 + $0xc0] sm:$0xff]
        %v299 = vld [vmem:[%s197 + $0xc8] sm:$0xff]
        %v300 = vld [vmem:[%s197 + $0xd0] sm:$0xff]
        %v301 = vld [vmem:[%s197 + $0xd8] sm:$0xff]
        %v302 = vld [vmem:[%s197 + $0xe0] sm:$0xff]
        %v303 = vld [vmem:[%s197 + $0xe8] sm:$0xff]
        %v304 = vld [vmem:[%s197 + $0xf0] sm:$0xff]
        %v305 = vld [vmem:[%s197 + $0xf8] sm:$0xff]
        %v306 = vld [vmem:[%s176] sm:$0xff]
        %v307 = vld [vmem:[%s176 + $0x8] sm:$0xff]
        %v308 = vld [vmem:[%s176 + $0x10] sm:$0xff]
        %v309 = vld [vmem:[%s176 + $0x18] sm:$0xff]
        %v310 = vld [vmem:[%s176 + $0x20] sm:$0xff]
        %v311 = vld [vmem:[%s176 + $0x28] sm:$0xff]
        %v312 = vld [vmem:[%s176 + $0x30] sm:$0xff]
        %v313 = vld [vmem:[%s176 + $0x38] sm:$0xff]
        %v314 = vld [vmem:[%s176 + $0x40] sm:$0xff]
        %v315 = vld [vmem:[%s176 + $0x48] sm:$0xff]
        %v316 = vld [vmem:[%s176 + $0x50] sm:$0xff]
        %v317 = vld [vmem:[%s176 + $0x58] sm:$0xff]
        %v318 = vld [vmem:[%s176 + $0x60] sm:$0xff]
        %v319 = vld [vmem:[%s176 + $0x68] sm:$0xff]
        %v320 = vld [vmem:[%s176 + $0x70] sm:$0xff]
        %v321 = vld [vmem:[%s176 + $0x78] sm:$0xff]
        %v322 = vld [vmem:[%s176 + $0x80] sm:$0xff]
        %v323 = vld [vmem:[%s176 + $0x88] sm:$0xff]
        %v324 = vld [vmem:[%s176 + $0x90] sm:$0xff]
        %v325 = vld [vmem:[%s176 + $0x98] sm:$0xff]
        %v326 = vld [vmem:[%s176 + $0xa0] sm:$0xff]
        %v327 = vld [vmem:[%s176 + $0xa8] sm:$0xff]
        %v328 = vld [vmem:[%s176 + $0xb0] sm:$0xff]
        %v329 = vld [vmem:[%s176 + $0xb8] sm:$0xff]
        %v330 = vld [vmem:[%s176 + $0xc0] sm:$0xff]
        %v331 = vld [vmem:[%s176 + $0xc8] sm:$0xff]
        %v332 = vld [vmem:[%s176 + $0xd0] sm:$0xff]
        %v333 = vld [vmem:[%s176 + $0xd8] sm:$0xff]
        %v334 = vld [vmem:[%s176 + $0xe0] sm:$0xff]
        %v335 = vld [vmem:[%s176 + $0xe8] sm:$0xff]
        %v336 = vld [vmem:[%s176 + $0xf0] sm:$0xff]
        %v337 = vld [vmem:[%s176 + $0xf8] sm:$0xff]
        %v370 = vunpack.c.l.b16 %v306
        %v371 = vunpack.c.h.b16 %v306
        %v372 = vunpack.c.l.b16 %v307
        %v373 = vunpack.c.h.b16 %v307
        %v374 = vunpack.c.l.b16 %v308
        %v375 = vunpack.c.h.b16 %v308
        %v376 = vunpack.c.l.b16 %v309
        %v377 = vunpack.c.h.b16 %v309
        %v378 = vunpack.c.l.b16 %v310
        %v379 = vunpack.c.h.b16 %v310
        %v380 = vunpack.c.l.b16 %v311
        %v381 = vunpack.c.h.b16 %v311
        %v382 = vunpack.c.l.b16 %v312
        %v383 = vunpack.c.h.b16 %v312
        %v384 = vunpack.c.l.b16 %v313
        %v385 = vunpack.c.h.b16 %v313
        %v386 = vunpack.c.l.b16 %v314
        %v387 = vunpack.c.h.b16 %v314
        %v388 = vunpack.c.l.b16 %v315
        %v389 = vunpack.c.h.b16 %v315
        %v390 = vunpack.c.l.b16 %v316
        %v391 = vunpack.c.h.b16 %v316
        %v392 = vunpack.c.l.b16 %v317
        %v393 = vunpack.c.h.b16 %v317
        %v394 = vunpack.c.l.b16 %v318
        %v395 = vunpack.c.h.b16 %v318
        %v396 = vunpack.c.l.b16 %v319
        %v397 = vunpack.c.h.b16 %v319
        %v398 = vunpack.c.l.b16 %v320
        %v399 = vunpack.c.h.b16 %v320
        %v400 = vunpack.c.l.b16 %v321
        %v401 = vunpack.c.h.b16 %v321
        %v402 = vunpack.c.l.b16 %v322
        %v403 = vunpack.c.h.b16 %v322
        %v404 = vunpack.c.l.b16 %v323
        %v405 = vunpack.c.h.b16 %v323
        %v406 = vunpack.c.l.b16 %v324
        %v407 = vunpack.c.h.b16 %v324
        %v408 = vunpack.c.l.b16 %v325
        %v409 = vunpack.c.h.b16 %v325
        %v410 = vunpack.c.l.b16 %v326
        %v411 = vunpack.c.h.b16 %v326
        %v412 = vunpack.c.l.b16 %v327
        %v413 = vunpack.c.h.b16 %v327
        %v414 = vunpack.c.l.b16 %v328
        %v415 = vunpack.c.h.b16 %v328
        %v416 = vunpack.c.l.b16 %v329
        %v417 = vunpack.c.h.b16 %v329
        %v418 = vunpack.c.l.b16 %v330
        %v419 = vunpack.c.h.b16 %v330
        %v420 = vunpack.c.l.b16 %v331
        %v421 = vunpack.c.h.b16 %v331
        %v422 = vunpack.c.l.b16 %v332
        %v423 = vunpack.c.h.b16 %v332
        %v424 = vunpack.c.l.b16 %v333
        %v425 = vunpack.c.h.b16 %v333
        %v426 = vunpack.c.l.b16 %v334
        %v427 = vunpack.c.h.b16 %v334
        %v428 = vunpack.c.l.b16 %v335
        %v429 = vunpack.c.h.b16 %v335
        %v430 = vunpack.c.l.b16 %v336
        %v431 = vunpack.c.h.b16 %v336
        %v432 = vunpack.c.l.b16 %v337
        %v433 = vunpack.c.h.b16 %v337
        %v434 = vpack.c.b16 %v372, %v370
        %v435 = vpack.c.b16 %v373, %v371
        %v436 = vpack.c.b16 %v376, %v374
        %v437 = vpack.c.b16 %v377, %v375
        %v438 = vpack.c.b16 %v380, %v378
        %v439 = vpack.c.b16 %v381, %v379
        %v440 = vpack.c.b16 %v384, %v382
        %v441 = vpack.c.b16 %v385, %v383
        %v442 = vpack.c.b16 %v388, %v386
        %v443 = vpack.c.b16 %v389, %v387
        %v444 = vpack.c.b16 %v392, %v390
        %v445 = vpack.c.b16 %v393, %v391
        %v446 = vpack.c.b16 %v396, %v394
        %v447 = vpack.c.b16 %v397, %v395
        %v448 = vpack.c.b16 %v400, %v398
        %v449 = vpack.c.b16 %v401, %v399
        %v450 = vpack.c.b16 %v404, %v402
        %v451 = vpack.c.b16 %v405, %v403
        %v452 = vpack.c.b16 %v408, %v406
        %v453 = vpack.c.b16 %v409, %v407
        %v454 = vpack.c.b16 %v412, %v410
        %v455 = vpack.c.b16 %v413, %v411
        %v456 = vpack.c.b16 %v416, %v414
        %v457 = vpack.c.b16 %v417, %v415
        %v458 = vpack.c.b16 %v420, %v418
        %v459 = vpack.c.b16 %v421, %v419
        %v460 = vpack.c.b16 %v424, %v422
        %v461 = vpack.c.b16 %v425, %v423
        %v462 = vpack.c.b16 %v428, %v426
        %v463 = vpack.c.b16 %v429, %v427
        %v464 = vpack.c.b16 %v432, %v430
        %v465 = vpack.c.b16 %v433, %v431
        %v530 = vunpack.c.l.b16 %v242
        %v531 = vunpack.c.l.b16 %v243
        %v532 = vunpack.c.l.b16 %v244
        %v533 = vunpack.c.l.b16 %v245
        %v534 = vunpack.c.l.b16 %v246
        %v535 = vunpack.c.l.b16 %v247
        %v536 = vunpack.c.l.b16 %v248
        %v537 = vunpack.c.l.b16 %v249
        %v538 = vunpack.c.l.b16 %v250
        %v539 = vunpack.c.l.b16 %v251
        %v540 = vunpack.c.l.b16 %v252
        %v541 = vunpack.c.l.b16 %v253
        %v542 = vunpack.c.l.b16 %v254
        %v543 = vunpack.c.l.b16 %v255
        %v544 = vunpack.c.l.b16 %v256
        %v545 = vunpack.c.l.b16 %v257
        %v546 = vunpack.c.l.b16 %v258
        %v547 = vunpack.c.l.b16 %v259
        %v548 = vunpack.c.l.b16 %v260
        %v549 = vunpack.c.l.b16 %v261
        %v550 = vunpack.c.l.b16 %v262
        %v551 = vunpack.c.l.b16 %v263
        %v552 = vunpack.c.l.b16 %v264
        %v553 = vunpack.c.l.b16 %v265
        %v554 = vunpack.c.l.b16 %v266
        %v555 = vunpack.c.l.b16 %v267
        %v556 = vunpack.c.l.b16 %v268
        %v557 = vunpack.c.l.b16 %v269
        %v558 = vunpack.c.l.b16 %v270
        %v559 = vunpack.c.l.b16 %v271
        %v560 = vunpack.c.l.b16 %v272
        %v561 = vunpack.c.l.b16 %v273
        %v562 = vpack.c.b16 %v531, %v530
        %v563 = vpack.c.b16 %v533, %v532
        %v564 = vpack.c.b16 %v535, %v534
        %v565 = vpack.c.b16 %v537, %v536
        %v566 = vpack.c.b16 %v539, %v538
        %v567 = vpack.c.b16 %v541, %v540
        %v568 = vpack.c.b16 %v543, %v542
        %v569 = vpack.c.b16 %v545, %v544
        %v570 = vpack.c.b16 %v547, %v546
        %v571 = vpack.c.b16 %v549, %v548
        %v572 = vpack.c.b16 %v551, %v550
        %v573 = vpack.c.b16 %v553, %v552
        %v574 = vpack.c.b16 %v555, %v554
        %v575 = vpack.c.b16 %v557, %v556
        %v576 = vpack.c.b16 %v559, %v558
        %v577 = vpack.c.b16 %v561, %v560
        %594 = vmatpush.bf16.msra.mxu0 %v569
        %595 = vmatpush.bf16.msra.mxu0 %v568
        %596 = vmatpush.bf16.msra.mxu0 %v567
        %597 = vmatpush.bf16.msra.mxu0 %v566
        %598 = vmatpush.bf16.msra.mxu0 %v565
        %599 = vmatpush.bf16.msra.mxu0 %v564
        %600 = vmatpush.bf16.msra.mxu0 %v563
        %601 = vmatpush.bf16.msra.mxu0 %v562
        %602 = vmatmul.bf16.gmra.mxu0 %v434
        %v603 = vpop.f32.mrf.mxu0
        %v604 = vadd.f32 0.0, %v603
        %v605 = vpop.f32.mrf.mxu0
        %v606 = vadd.f32 0.0, %v605
        %607 = vmatmul.bf16.gmra.mxu0 %v436
        %v608 = vpop.f32.mrf.mxu0
        %v609 = vadd.f32 0.0, %v608
        %v610 = vpop.f32.mrf.mxu0
        %v611 = vadd.f32 0.0, %v610
        %612 = vmatmul.bf16.gmra.mxu0 %v438
        %v613 = vpop.f32.mrf.mxu0
        %v614 = vadd.f32 0.0, %v613
        %v615 = vpop.f32.mrf.mxu0
        %v616 = vadd.f32 0.0, %v615
        %617 = vmatmul.bf16.gmra.mxu0 %v440
        %v618 = vpop.f32.mrf.mxu0
        %v619 = vadd.f32 0.0, %v618
        %v620 = vpop.f32.mrf.mxu0
        %v621 = vadd.f32 0.0, %v620
        %622 = vmatmul.bf16.gmra.mxu0 %v442
        %v623 = vpop.f32.mrf.mxu0
        %v624 = vadd.f32 0.0, %v623
        %v625 = vpop.f32.mrf.mxu0
        %v626 = vadd.f32 0.0, %v625
        %627 = vmatmul.bf16.gmra.mxu0 %v444
        %v628 = vpop.f32.mrf.mxu0
        %v629 = vadd.f32 0.0, %v628
        %v630 = vpop.f32.mrf.mxu0
        %v631 = vadd.f32 0.0, %v630
        %632 = vmatmul.bf16.gmra.mxu0 %v446
        %v633 = vpop.f32.mrf.mxu0
        %v634 = vadd.f32 0.0, %v633
        %v635 = vpop.f32.mrf.mxu0
        %v636 = vadd.f32 0.0, %v635
        %637 = vmatmul.bf16.gmra.mxu0 %v448
        %v638 = vpop.f32.mrf.mxu0
        %v639 = vadd.f32 0.0, %v638
        %v640 = vpop.f32.mrf.mxu0
        %v641 = vadd.f32 0.0, %v640
        %642 = vmatmul.bf16.gmra.mxu0 %v450
        %v643 = vpop.f32.mrf.mxu0
        %v644 = vadd.f32 0.0, %v643
        %v645 = vpop.f32.mrf.mxu0
        %v646 = vadd.f32 0.0, %v645
        %647 = vmatmul.bf16.gmra.mxu0 %v452
        %v648 = vpop.f32.mrf.mxu0
        %v649 = vadd.f32 0.0, %v648
        %v650 = vpop.f32.mrf.mxu0
        %v651 = vadd.f32 0.0, %v650
        %652 = vmatmul.bf16.gmra.mxu0 %v454
        %v653 = vpop.f32.mrf.mxu0
        %v654 = vadd.f32 0.0, %v653
        %v655 = vpop.f32.mrf.mxu0
        %v656 = vadd.f32 0.0, %v655
        %657 = vmatmul.bf16.gmra.mxu0 %v456
        %v658 = vpop.f32.mrf.mxu0
        %v659 = vadd.f32 0.0, %v658
        %v660 = vpop.f32.mrf.mxu0
        %v661 = vadd.f32 0.0, %v660
        %662 = vmatmul.bf16.gmra.mxu0 %v458
        %v663 = vpop.f32.mrf.mxu0
        %v664 = vadd.f32 0.0, %v663
        %v665 = vpop.f32.mrf.mxu0
        %v666 = vadd.f32 0.0, %v665
        %667 = vmatmul.bf16.gmra.mxu0 %v460
        %v668 = vpop.f32.mrf.mxu0
        %v669 = vadd.f32 0.0, %v668
        %v670 = vpop.f32.mrf.mxu0
        %v671 = vadd.f32 0.0, %v670
        %672 = vmatmul.bf16.gmra.mxu0 %v462
        %v673 = vpop.f32.mrf.mxu0
        %v674 = vadd.f32 0.0, %v673
        %v675 = vpop.f32.mrf.mxu0
        %v676 = vadd.f32 0.0, %v675
        %677 = vmatmul.bf16.gmra.mxu0 %v464
        %v678 = vpop.f32.mrf.mxu0
        %v679 = vadd.f32 0.0, %v678
        %v680 = vpop.f32.mrf.mxu0
        %v681 = vadd.f32 0.0, %v680
        %682 = vdwg.mxu0
        %683 = vmatpush.bf16.msra.mxu0 %v577
        %684 = vmatpush.bf16.msra.mxu0 %v576
        %685 = vmatpush.bf16.msra.mxu0 %v575
        %686 = vmatpush.bf16.msra.mxu0 %v574
        %687 = vmatpush.bf16.msra.mxu0 %v573
        %688 = vmatpush.bf16.msra.mxu0 %v572
        %689 = vmatpush.bf16.msra.mxu0 %v571
        %690 = vmatpush.bf16.msra.mxu0 %v570
        %691 = vmatmul.bf16.gmra.mxu0 %v435
        %v692 = vpop.f32.mrf.mxu0
        %v693 = vadd.f32 %v604, %v692
        %v694 = vpop.f32.mrf.mxu0
        %v695 = vadd.f32 %v606, %v694
        %696 = vmatmul.bf16.gmra.mxu0 %v437
        %v697 = vpop.f32.mrf.mxu0
        %v698 = vadd.f32 %v609, %v697
        %v699 = vpop.f32.mrf.mxu0
        %v700 = vadd.f32 %v611, %v699
        %701 = vmatmul.bf16.gmra.mxu0 %v439
        %v702 = vpop.f32.mrf.mxu0
        %v703 = vadd.f32 %v614, %v702
        %v704 = vpop.f32.mrf.mxu0
        %v705 = vadd.f32 %v616, %v704
        %706 = vmatmul.bf16.gmra.mxu0 %v441
        %v707 = vpop.f32.mrf.mxu0
        %v708 = vadd.f32 %v619, %v707
        %v709 = vpop.f32.mrf.mxu0
        %v710 = vadd.f32 %v621, %v709
        %711 = vmatmul.bf16.gmra.mxu0 %v443
        %v712 = vpop.f32.mrf.mxu0
        %v713 = vadd.f32 %v624, %v712
        %v714 = vpop.f32.mrf.mxu0
        %v715 = vadd.f32 %v626, %v714
        %716 = vmatmul.bf16.gmra.mxu0 %v445
        %v717 = vpop.f32.mrf.mxu0
        %v718 = vadd.f32 %v629, %v717
        %v719 = vpop.f32.mrf.mxu0
        %v720 = vadd.f32 %v631, %v719
        %721 = vmatmul.bf16.gmra.mxu0 %v447
        %v722 = vpop.f32.mrf.mxu0
        %v723 = vadd.f32 %v634, %v722
        %v724 = vpop.f32.mrf.mxu0
        %v725 = vadd.f32 %v636, %v724
        %726 = vmatmul.bf16.gmra.mxu0 %v449
        %v727 = vpop.f32.mrf.mxu0
        %v728 = vadd.f32 %v639, %v727
        %v729 = vpop.f32.mrf.mxu0
        %v730 = vadd.f32 %v641, %v729
        %731 = vmatmul.bf16.gmra.mxu0 %v451
        %v732 = vpop.f32.mrf.mxu0
        %v733 = vadd.f32 %v644, %v732
        %v734 = vpop.f32.mrf.mxu0
        %v735 = vadd.f32 %v646, %v734
        %736 = vmatmul.bf16.gmra.mxu0 %v453
        %v737 = vpop.f32.mrf.mxu0
        %v738 = vadd.f32 %v649, %v737
        %v739 = vpop.f32.mrf.mxu0
        %v740 = vadd.f32 %v651, %v739
        %741 = vmatmul.bf16.gmra.mxu0 %v455
        %v742 = vpop.f32.mrf.mxu0
        %v743 = vadd.f32 %v654, %v742
        %v744 = vpop.f32.mrf.mxu0
        %v745 = vadd.f32 %v656, %v744
        %746 = vmatmul.bf16.gmra.mxu0 %v457
        %v747 = vpop.f32.mrf.mxu0
        %v748 = vadd.f32 %v659, %v747
        %v749 = vpop.f32.mrf.mxu0
        %v750 = vadd.f32 %v661, %v749
        %751 = vmatmul.bf16.gmra.mxu0 %v459
        %v752 = vpop.f32.mrf.mxu0
        %v753 = vadd.f32 %v664, %v752
        %v754 = vpop.f32.mrf.mxu0
        %v755 = vadd.f32 %v666, %v754
        %756 = vmatmul.bf16.gmra.mxu0 %v461
        %v757 = vpop.f32.mrf.mxu0
        %v758 = vadd.f32 %v669, %v757
        %v759 = vpop.f32.mrf.mxu0
        %v760 = vadd.f32 %v671, %v759
        %761 = vmatmul.bf16.gmra.mxu0 %v463
        %v762 = vpop.f32.mrf.mxu0
        %v763 = vadd.f32 %v674, %v762
        %v764 = vpop.f32.mrf.mxu0
        %v765 = vadd.f32 %v676, %v764
        %766 = vmatmul.bf16.gmra.mxu0 %v465
        %v767 = vpop.f32.mrf.mxu0
        %v768 = vadd.f32 %v679, %v767
        %v769 = vpop.f32.mrf.mxu0
        %v770 = vadd.f32 %v681, %v769
        %771 = vdwg.mxu0
        %v772 = vadd.f32 %v274, %v693
        %v773 = vadd.f32 %v275, %v695
        %v774 = vadd.f32 %v276, %v698
        %v775 = vadd.f32 %v277, %v700
        %v776 = vadd.f32 %v278, %v703
        %v777 = vadd.f32 %v279, %v705
        %v778 = vadd.f32 %v280, %v708
        %v779 = vadd.f32 %v281, %v710
        %v780 = vadd.f32 %v282, %v713
        %v781 = vadd.f32 %v283, %v715
        %v782 = vadd.f32 %v284, %v718
        %v783 = vadd.f32 %v285, %v720
        %v784 = vadd.f32 %v286, %v723
        %v785 = vadd.f32 %v287, %v725
        %v786 = vadd.f32 %v288, %v728
        %v787 = vadd.f32 %v289, %v730
        %v788 = vadd.f32 %v290, %v733
        %v789 = vadd.f32 %v291, %v735
        %v790 = vadd.f32 %v292, %v738
        %v791 = vadd.f32 %v293, %v740
        %v792 = vadd.f32 %v294, %v743
        %v793 = vadd.f32 %v295, %v745
        %v794 = vadd.f32 %v296, %v748
        %v795 = vadd.f32 %v297, %v750
        %v796 = vadd.f32 %v298, %v753
        %v797 = vadd.f32 %v299, %v755
        %v798 = vadd.f32 %v300, %v758
        %v799 = vadd.f32 %v301, %v760
        %v800 = vadd.f32 %v302, %v763
        %v801 = vadd.f32 %v303, %v765
        %v802 = vadd.f32 %v304, %v768
        %v803 = vadd.f32 %v305, %v770
        %804 = vst [vmem:[%s197] sm:$0xff] %v772
        %805 = vst [vmem:[%s197 + $0x8] sm:$0xff] %v773
        %806 = vst [vmem:[%s197 + $0x10] sm:$0xff] %v774
        %807 = vst [vmem:[%s197 + $0x18] sm:$0xff] %v775
        %808 = vst [vmem:[%s197 + $0x20] sm:$0xff] %v776
        %809 = vst [vmem:[%s197 + $0x28] sm:$0xff] %v777
        %810 = vst [vmem:[%s197 + $0x30] sm:$0xff] %v778
        %811 = vst [vmem:[%s197 + $0x38] sm:$0xff] %v779
        %812 = vst [vmem:[%s197 + $0x40] sm:$0xff] %v780
        %813 = vst [vmem:[%s197 + $0x48] sm:$0xff] %v781
        %814 = vst [vmem:[%s197 + $0x50] sm:$0xff] %v782
        %815 = vst [vmem:[%s197 + $0x58] sm:$0xff] %v783
        %816 = vst [vmem:[%s197 + $0x60] sm:$0xff] %v784
        %817 = vst [vmem:[%s197 + $0x68] sm:$0xff] %v785
        %818 = vst [vmem:[%s197 + $0x70] sm:$0xff] %v786
        %819 = vst [vmem:[%s197 + $0x78] sm:$0xff] %v787
        %820 = vst [vmem:[%s197 + $0x80] sm:$0xff] %v788
        %821 = vst [vmem:[%s197 + $0x88] sm:$0xff] %v789
        %822 = vst [vmem:[%s197 + $0x90] sm:$0xff] %v790
        %823 = vst [vmem:[%s197 + $0x98] sm:$0xff] %v791
        %824 = vst [vmem:[%s197 + $0xa0] sm:$0xff] %v792
        %825 = vst [vmem:[%s197 + $0xa8] sm:$0xff] %v793
        %826 = vst [vmem:[%s197 + $0xb0] sm:$0xff] %v794
        %827 = vst [vmem:[%s197 + $0xb8] sm:$0xff] %v795
        %828 = vst [vmem:[%s197 + $0xc0] sm:$0xff] %v796
        %829 = vst [vmem:[%s197 + $0xc8] sm:$0xff] %v797
        %830 = vst [vmem:[%s197 + $0xd0] sm:$0xff] %v798
        %831 = vst [vmem:[%s197 + $0xd8] sm:$0xff] %v799
        %832 = vst [vmem:[%s197 + $0xe0] sm:$0xff] %v800
        %833 = vst [vmem:[%s197 + $0xe8] sm:$0xff] %v801
        %834 = vst [vmem:[%s197 + $0xf0] sm:$0xff] %v802
        %835 = vst [vmem:[%s197 + $0xf8] sm:$0xff] %v803
        %p836 = scmp.eq.s32.totalorder %s25, 1
        // Predicated region
        $region41: #{tpu_custom_call.1} parent=27 // pred_check
          %p837 = pneg %p836
        $region42: #{tpu_custom_call.1} parent=27 // pred_check_branch
          %839 = sbr.rel (%p837) target = $region44
        $region43: #{tpu_custom_call.1} parent=27 // pred_region
          %v840 = vld [vmem:[%s197] sm:$0xff]
          %v841 = vld [vmem:[%s197 + $0x8] sm:$0xff]
          %v842 = vld [vmem:[%s197 + $0x10] sm:$0xff]
          %v843 = vld [vmem:[%s197 + $0x18] sm:$0xff]
          %v844 = vld [vmem:[%s197 + $0x20] sm:$0xff]
          %v845 = vld [vmem:[%s197 + $0x28] sm:$0xff]
          %v846 = vld [vmem:[%s197 + $0x30] sm:$0xff]
          %v847 = vld [vmem:[%s197 + $0x38] sm:$0xff]
          %v848 = vld [vmem:[%s197 + $0x40] sm:$0xff]
          %v849 = vld [vmem:[%s197 + $0x48] sm:$0xff]
          %v850 = vld [vmem:[%s197 + $0x50] sm:$0xff]
          %v851 = vld [vmem:[%s197 + $0x58] sm:$0xff]
          %v852 = vld [vmem:[%s197 + $0x60] sm:$0xff]
          %v853 = vld [vmem:[%s197 + $0x68] sm:$0xff]
          %v854 = vld [vmem:[%s197 + $0x70] sm:$0xff]
          %v855 = vld [vmem:[%s197 + $0x78] sm:$0xff]
          %v856 = vld [vmem:[%s197 + $0x80] sm:$0xff]
          %v857 = vld [vmem:[%s197 + $0x88] sm:$0xff]
          %v858 = vld [vmem:[%s197 + $0x90] sm:$0xff]
          %v859 = vld [vmem:[%s197 + $0x98] sm:$0xff]
          %v860 = vld [vmem:[%s197 + $0xa0] sm:$0xff]
          %v861 = vld [vmem:[%s197 + $0xa8] sm:$0xff]
          %v862 = vld [vmem:[%s197 + $0xb0] sm:$0xff]
          %v863 = vld [vmem:[%s197 + $0xb8] sm:$0xff]
          %v864 = vld [vmem:[%s197 + $0xc0] sm:$0xff]
          %v865 = vld [vmem:[%s197 + $0xc8] sm:$0xff]
          %v866 = vld [vmem:[%s197 + $0xd0] sm:$0xff]
          %v867 = vld [vmem:[%s197 + $0xd8] sm:$0xff]
          %v868 = vld [vmem:[%s197 + $0xe0] sm:$0xff]
          %v869 = vld [vmem:[%s197 + $0xe8] sm:$0xff]
          %v870 = vld [vmem:[%s197 + $0xf0] sm:$0xff]
          %v871 = vld [vmem:[%s197 + $0xf8] sm:$0xff]
          %v872 = vmax.f32 %v840, 0.0
          %v873 = vmax.f32 %v841, 0.0
          %v874 = vmax.f32 %v842, 0.0
          %v875 = vmax.f32 %v843, 0.0
          %v876 = vmax.f32 %v844, 0.0
          %v877 = vmax.f32 %v845, 0.0
          %v878 = vmax.f32 %v846, 0.0
          %v879 = vmax.f32 %v847, 0.0
          %v880 = vmax.f32 %v848, 0.0
          %v881 = vmax.f32 %v849, 0.0
          %v882 = vmax.f32 %v850, 0.0
          %v883 = vmax.f32 %v851, 0.0
          %v884 = vmax.f32 %v852, 0.0
          %v885 = vmax.f32 %v853, 0.0
          %v886 = vmax.f32 %v854, 0.0
          %v887 = vmax.f32 %v855, 0.0
          %v888 = vmax.f32 %v856, 0.0
          %v889 = vmax.f32 %v857, 0.0
          %v890 = vmax.f32 %v858, 0.0
          %v891 = vmax.f32 %v859, 0.0
          %v892 = vmax.f32 %v860, 0.0
          %v893 = vmax.f32 %v861, 0.0
          %v894 = vmax.f32 %v862, 0.0
          %v895 = vmax.f32 %v863, 0.0
          %v896 = vmax.f32 %v864, 0.0
          %v897 = vmax.f32 %v865, 0.0
          %v898 = vmax.f32 %v866, 0.0
          %v899 = vmax.f32 %v867, 0.0
          %v900 = vmax.f32 %v868, 0.0
          %v901 = vmax.f32 %v869, 0.0
          %v902 = vmax.f32 %v870, 0.0
          %v903 = vmax.f32 %v871, 0.0
          %904 = vst [vmem:[%s197] sm:$0xff] %v872
          %905 = vst [vmem:[%s197 + $0x8] sm:$0xff] %v873
          %906 = vst [vmem:[%s197 + $0x10] sm:$0xff] %v874
          %907 = vst [vmem:[%s197 + $0x18] sm:$0xff] %v875
          %908 = vst [vmem:[%s197 + $0x20] sm:$0xff] %v876
          %909 = vst [vmem:[%s197 + $0x28] sm:$0xff] %v877
          %910 = vst [vmem:[%s197 + $0x30] sm:$0xff] %v878
          %911 = vst [vmem:[%s197 + $0x38] sm:$0xff] %v879
          %912 = vst [vmem:[%s197 + $0x40] sm:$0xff] %v880
          %913 = vst [vmem:[%s197 + $0x48] sm:$0xff] %v881
          %914 = vst [vmem:[%s197 + $0x50] sm:$0xff] %v882
          %915 = vst [vmem:[%s197 + $0x58] sm:$0xff] %v883
          %916 = vst [vmem:[%s197 + $0x60] sm:$0xff] %v884
          %917 = vst [vmem:[%s197 + $0x68] sm:$0xff] %v885
          %918 = vst [vmem:[%s197 + $0x70] sm:$0xff] %v886
          %919 = vst [vmem:[%s197 + $0x78] sm:$0xff] %v887
          %920 = vst [vmem:[%s197 + $0x80] sm:$0xff] %v888
          %921 = vst [vmem:[%s197 + $0x88] sm:$0xff] %v889
          %922 = vst [vmem:[%s197 + $0x90] sm:$0xff] %v890
          %923 = vst [vmem:[%s197 + $0x98] sm:$0xff] %v891
          %924 = vst [vmem:[%s197 + $0xa0] sm:$0xff] %v892
          %925 = vst [vmem:[%s197 + $0xa8] sm:$0xff] %v893
          %926 = vst [vmem:[%s197 + $0xb0] sm:$0xff] %v894
          %927 = vst [vmem:[%s197 + $0xb8] sm:$0xff] %v895
          %928 = vst [vmem:[%s197 + $0xc0] sm:$0xff] %v896
          %929 = vst [vmem:[%s197 + $0xc8] sm:$0xff] %v897
          %930 = vst [vmem:[%s197 + $0xd0] sm:$0xff] %v898
          %931 = vst [vmem:[%s197 + $0xd8] sm:$0xff] %v899
          %932 = vst [vmem:[%s197 + $0xe0] sm:$0xff] %v900
          %933 = vst [vmem:[%s197 + $0xe8] sm:$0xff] %v901
          %934 = vst [vmem:[%s197 + $0xf0] sm:$0xff] %v902
          %935 = vst [vmem:[%s197 + $0xf8] sm:$0xff] %v903
        $region44: #{tpu_custom_call.1} parent=27 // pred_fallthru
          _
        %s936 = sand.u32 %s89, 1
        %s937 = scalar_lea.sflag [#allocation4], %s936
        %s938 = sand.u32 %s89, 1
        %s939 = smul.addr %s938, 256
        %s940 = scalar_lea.vmem [#allocation7], %s939
        // Predicated region
        $region45: #{tpu_custom_call.1} parent=27 // pred_check
          %p941 = pneg %p99
        $region46: #{tpu_custom_call.1} parent=27 // pred_check_branch
          %943 = sbr.rel (%p941) target = $region48
        $region47: #{tpu_custom_call.1} parent=27 // pred_region
          %s944 = smul.u32 32, %s24
          %946 = vsyncadd %s937, 0
          %s947 = smul.addr %s944, 8
          %s948 = scalar_lea.hbm %s2, %s947
          %s949 = sshll.u32 %s940, 4
          %s950 = int_to_ptr.vmem [resolvable:$true] %s949
          %s951 = sshll.u32 %s948, 4
          %s952 = int_to_ptr.hbm [resolvable:$true] %s951
          %957 = dma.vmem_to_hbm [thread:$0]  %s950, 4096, %s952, %s937, 128, 128, 8
        $region48: #{tpu_custom_call.1} parent=27 // pred_fallthru
          _
      $region28: #{tpu_custom_call.1} parent=5 // pred_fallthru
        _
      %p958 = scmp.le.s32.totalorder 2, %s15
      // Predicated region
      $region49: #{tpu_custom_call.1} parent=5 // pred_check
        %p959 = pneg %p958
      $region50: #{tpu_custom_call.1} parent=5 // pred_check_branch
        %961 = sbr.rel (%p959) target = $region52
      $region51: #{tpu_custom_call.1} parent=5 // pred_region
        %s962 = ssub.s32 %s15, 2
        // Predicated region
        $region53: #{tpu_custom_call.1} parent=51 // pred_check
          %p963 = pneg %p105
        $region54: #{tpu_custom_call.1} parent=51 // pred_check_branch
          %965 = sbr.rel (%p963) target = $region56
        $region55: #{tpu_custom_call.1} parent=51 // pred_region
          %s966 = sand.u32 %s90, 1
          %s967 = scalar_lea.sflag [#allocation4], %s966
          %s968 = sand.u32 %s90, 1
          %s969 = smul.addr %s968, 256
          %s970 = scalar_lea.vmem [#allocation7], %s969
          %972 = dma.done %s967, 4096
        $region56: #{tpu_custom_call.1} parent=51 // pred_fallthru
          _
      $region52: #{tpu_custom_call.1} parent=5 // pred_fallthru
        _
    $region6: #{tpu_custom_call.1} parent=1 // loop_footer
      %s19 = sadd.s32 1, %s15
    $region7: #{tpu_custom_call.1} parent=1 // loop_footer_branch
      %14 = sbr.rel target = $region3
    $region8: #{tpu_custom_call.1} parent=1 // loop_exit
      _
    %973 = vsyncpa [#allocation3], 1
    %s974 = scalar_lea.sflag [#allocation3], 1
    %975 = vsyncpa %s974, 1
    %976 = vsyncpa [#allocation6], 1
    %s977 = scalar_lea.sflag [#allocation6], 1
    %978 = vsyncpa %s977, 1
    %979 = vsyncpa [#allocation4], 1
    %s980 = scalar_lea.sflag [#allocation4], 1
    %981 = vsyncpa %s980, 1

</llo_original>
